<compile_context>
chip_gen: v7x
topology: tpu7x:2x2x1
jax: 0.10.0
libtpu: 0.0.40
codegen_flags: <defaults>
</compile_context>

<pallas_src>
import functools

import jax
import jax.numpy as jnp
from jax.experimental import pallas as pl
from jax.experimental.pallas import tpu as pltpu

LANE = 128       # lane width: anchor tiles are multiples of this
MAX_TA = 2048    # max anchor tile (lanes) -- amortizes per-step overhead


def _round_up(v, m):
    return ((v + m - 1) // m) * m


# ----------------------------------------------------------------------------
# Fused softmax + expectation kernel
# ----------------------------------------------------------------------------
def _dfl_kernel(x_ref, w_ref, o_ref):
    # x_ref: (B4, CH, TA) logits   w_ref: (CH, 1) bin values   o_ref: (B4, 1, TA)
    x = x_ref[...].astype(jnp.float32)
    w = w_ref[...].astype(jnp.float32)                        # (CH, 1)
    m = jnp.max(x, axis=1, keepdims=True)                     # (B4, 1, TA)
    e = jnp.exp(x - m)                                        # EUP slot
    s = jnp.sum(e, axis=1, keepdims=True)                     # >= 1 -> safe recip
    num = jnp.sum(e * w[None, :, :], axis=1, keepdims=True)   # weighted sum
    # expectation = num / s ; approximate reciprocal lands in the EUP slot.
    # Output traffic is 1/ch of input traffic, so the single-sublane store
    # pattern of the (B4, 1, TA) block is not a bottleneck.
    o_ref[...] = (num * pl.reciprocal(s, approx=True)).astype(o_ref.dtype)


def dfl_forward(x, w, ch=16, *, max_ta=MAX_TA):
    """x: (B, 4*ch, A) logits, w: (ch,) conv weights (arange(ch)). Returns (B,4,A)."""
    b, c, a = x.shape
    assert c == 4 * ch, (c, ch)
    b4 = 4 * b

    # Contiguous (zero-copy) view: channel c = i*ch + j  ->  (4*b + i, j, a).
    xr = x.reshape(b4, ch, a)
    w2 = w.reshape(ch, 1).astype(jnp.float32)

    # Lane-aligned anchor tile, auto-shrunk to keep the double-buffered working
    # set well under v7x's 64 MiB VMEM.
    ta = max(min(max_ta, _round_up(a, LANE)), LANE)

    def est_bytes(t):
        in_b = b4 * ch * t * x.dtype.itemsize
        out_b = b4 * t * x.dtype.itemsize
        return 2 * (in_b + out_b) + ch * 4          # 2x = double buffering

    while ta > LANE and est_bytes(ta) > (40 << 20):
        ta //= 2

    grid = (pl.cdiv(a, ta),)                         # masked edge block, no pad
    vmem_bytes = min(max(est_bytes(ta) + (2 << 20), 4 << 20), 64 << 20)

    out = pl.pallas_call(
        _dfl_kernel,
        out_shape=jax.ShapeDtypeStruct((b4, 1, a), x.dtype),
        grid=grid,
        in_specs=[
            pl.BlockSpec((b4, ch, ta), lambda t: (0, 0, t)),
            pl.BlockSpec((ch, 1), lambda t: (0, 0)),   # revisited block: no re-DMA
        ],
        out_specs=pl.BlockSpec((b4, 1, ta), lambda t: (0, 0, t)),
        compiler_params=pltpu.CompilerParams(
            dimension_semantics=("parallel",),       # megacore-shard anchor tiles
            vmem_limit_bytes=vmem_bytes,
        ),
    )(xr, w2)

    # Contiguous reshape (free): (B*4, 1, A) -> (B, 4, A).
    return out.reshape(b, 4, a)


# ----------------------------------------------------------------------------
if __name__ == "__main__":
    CH = 16
    w = jnp.arange(CH, dtype=jnp.float32)            # DFL's fixed 1x1 conv weight
    key = jax.random.PRNGKey(0)

    def ref_dfl(x):
        # Pure-JAX reference mirroring the PyTorch forward exactly.
        B, _, A = x.shape
        xt = jnp.transpose(x.reshape(B, 4, CH, A), (0, 2, 1, 3))   # (B, CH, 4, A)
        return jnp.einsum("bcia,c->bia", jax.nn.softmax(xt, axis=1), w)

    # (shape, max anchor tile):
    #   case 1: canonical tiny shape (B=2, A=8)
    #   case 2: unaligned A=333 with a small tile -> multi-step "parallel" grid
    #           with a masked (partial) edge block and no host-side padding.
    cases = [((2, 4 * CH, 8), MAX_TA),
             ((1, 4 * CH, 333), 128)]

    for shape, mta in cases:
        key, sub = jax.random.split(key)
        x = jax.random.normal(sub, shape, jnp.float32)
        f = jax.jit(functools.partial(dfl_forward, ch=CH, max_ta=mta))
        out = jax.block_until_ready(f(x, w))

        bsz, _, a = shape
        assert out.shape == (bsz, 4, a), out.shape
        assert bool(jnp.isfinite(out).all())
        ref = ref_dfl(x)
        # approx reciprocal on the EUP -> tolerance, not bit-exactness
        assert bool(jnp.allclose(out, ref, rtol=2e-2, atol=2e-2)), (
            float(jnp.max(jnp.abs(out - ref))))

    print("KERNEL_OK")
</pallas_src>

<mosaic_0001>
module attributes {stable_mosaic.version = 11 : i64} {
  func.func @_dfl_kernel(%arg0: i32, %arg1: memref<8x16x128xf32, #tpu.memory_space<vmem>>, %arg2: memref<16x1xf32, #tpu.memory_space<vmem>>, %arg3: memref<8x1x128xf32, #tpu.memory_space<vmem>>) attributes {dimension_semantics = [#tpu.dimension_semantics<parallel>], iteration_bounds = array<i64: 1>, scalar_prefetch = 0 : i64, scratch_operands = 0 : i64, tpu.core_type = #tpu.core_type<tc>, window_params = [{transform_indices = @transform_0, window_bounds = array<i64: 8, 16, 128>}, {pipeline_mode = #tpu.pipeline_mode<synchronous>, transform_indices = @transform_1, window_bounds = array<i64: 16, 1>}, {transform_indices = @transform_2, window_bounds = array<i64: 8, 1, 128>}]} {
    %c0 = arith.constant 0 : index
    %c0_0 = arith.constant 0 : index
    %c0_1 = arith.constant 0 : index
    %0 = vector.load %arg1[%c0, %c0_0, %c0_1] : memref<8x16x128xf32, #tpu.memory_space<vmem>>, vector<8x16x128xf32>
    %c0_2 = arith.constant 0 : index
    %c0_3 = arith.constant 0 : index
    %1 = vector.load %arg2[%c0_2, %c0_3] : memref<16x1xf32, #tpu.memory_space<vmem>>, vector<16x1xf32>
    %cst = arith.constant dense<0xFF800000> : vector<8x128xf32>
    %2 = vector.multi_reduction <maximumf>, %0, %cst [1] : vector<8x16x128xf32> to vector<8x128xf32>
    %3 = vector.shape_cast %2 : vector<8x128xf32> to vector<8x1x128xf32>
    %4 = vector.broadcast %3 : vector<8x1x128xf32> to vector<8x16x128xf32>
    %5 = arith.subf %0, %4 : vector<8x16x128xf32>
    %6 = math.exp %5 : vector<8x16x128xf32>
    %cst_4 = arith.constant dense<0.000000e+00> : vector<8x128xf32>
    %7 = vector.multi_reduction <add>, %6, %cst_4 [1] : vector<8x16x128xf32> to vector<8x128xf32>
    %8 = vector.shape_cast %7 : vector<8x128xf32> to vector<8x1x128xf32>
    %9 = vector.shape_cast %1 : vector<16x1xf32> to vector<1x16x1xf32>
    %10 = vector.broadcast %9 : vector<1x16x1xf32> to vector<8x16x128xf32>
    %11 = arith.mulf %6, %10 : vector<8x16x128xf32>
    %cst_5 = arith.constant dense<0.000000e+00> : vector<8x128xf32>
    %12 = vector.multi_reduction <add>, %11, %cst_5 [1] : vector<8x16x128xf32> to vector<8x128xf32>
    %13 = vector.shape_cast %12 : vector<8x128xf32> to vector<8x1x128xf32>
    %14 = tpu.reciprocal %8 {approx = true} : vector<8x1x128xf32> -> vector<8x1x128xf32>
    %15 = arith.mulf %13, %14 : vector<8x1x128xf32>
    %c0_6 = arith.constant 0 : index
    %c0_7 = arith.constant 0 : index
    %c0_8 = arith.constant 0 : index
    %16 = vector.load %arg3[%c0_6, %c0_7, %c0_8] : memref<8x1x128xf32, #tpu.memory_space<vmem>>, vector<8x1x128xf32>
    tpu.vector_store %arg3[%c0_6, %c0_7, %c0_8], %15 {strides = array<i32>} : memref<8x1x128xf32, #tpu.memory_space<vmem>>, vector<8x1x128xf32>,
    return
  }
  func.func @transform_0(%arg0: i32) -> (i32, i32, i32) {
    %c0_i32 = arith.constant 0 : i32
    %c0_i32_0 = arith.constant 0 : i32
    %c0_i32_1 = arith.constant 0 : i32
    return %c0_i32, %c0_i32_0, %arg0 : i32, i32, i32
  }
  func.func @transform_1(%arg0: i32) -> (i32, i32) {
    %c0_i32 = arith.constant 0 : i32
    %c0_i32_0 = arith.constant 0 : i32
    %c0_i32_1 = arith.constant 0 : i32
    return %c0_i32, %c0_i32_0 : i32, i32
  }
  func.func @transform_2(%arg0: i32) -> (i32, i32, i32) {
    %c0_i32 = arith.constant 0 : i32
    %c0_i32_0 = arith.constant 0 : i32
    %c0_i32_1 = arith.constant 0 : i32
    return %c0_i32, %c0_i32_0, %arg0 : i32, i32, i32
  }
}

</mosaic_0001>

<llo_original>
// kernel: dfl_forward.1
$region0: #{dfl_forward.1}
  #allocation0 [shape = 'u32[]', space=smem, size = 0x4, offset = 0x4, fixed_abs, tag = 'smem constant byte address 0x4 - core index']
  #allocation1 [shape = 'u32[144,128]{1,0:T(1,128)}', space=vmem, size = 0x12000, scoped, tag = 'internal scratch']
  %s0 = inlined_call_operand.vmem [shape: f32[8,16,8], index: 0, kind: input, shape index: {}]
  %s1 = inlined_call_operand.vmem [shape: f32[16,1], index: 1, kind: input, shape index: {}]
  %s2 = inlined_call_operand.hbm [shape: f32[8,1,8], index: 2, kind: output, shape index: {}]
  %s3 = sld [smem:[#allocation0]]
  $region18: #{dfl_forward.1} parent=0
    _
  %s5 = ssub.s32 1, %s3
  %s6 = scalar_select 0, %s5, %s3
  $region1: #{dfl_forward.1} parent=0
    #allocation2 [shape = 'u8[4096]{0}', space=vmem, size = 0x1000, scoped, tag = 'output window, operand 0, single buffered']
    #allocation3 [shape = 's32[1]{0}', space=sflag, size = 0x4, scoped, tag = 'scoped memory for dfl_forward.1']
    %7 = vsyncpa [#allocation3], 0
    // Predicated region
    $region2: #{dfl_forward.1} parent=1 // pred_check
      _
    $region3: #{dfl_forward.1} parent=1 // pred_check_branch
      %9 = sbr.rel (0) target = $region5
    $region4: #{dfl_forward.1} parent=1 // pred_region
      _
    $region5: #{dfl_forward.1} parent=1 // pred_fallthru
      _
    // Predicated region
    $region6: #{dfl_forward.1} parent=1 // pred_check
      _
    $region7: #{dfl_forward.1} parent=1 // pred_check_branch
      %11 = sbr.rel (0) target = $region9
    $region8: #{dfl_forward.1} parent=1 // pred_region
      _
    $region9: #{dfl_forward.1} parent=1 // pred_fallthru
      _
    %v12 = vld [vmem:[%s0] sm:$0xff]
    %v13 = vld [vmem:[%s0 + $0x8] sm:$0xff]
    %v14 = vld [vmem:[%s0 + $0x10] sm:$0xff]
    %v15 = vld [vmem:[%s0 + $0x18] sm:$0xff]
    %v16 = vld [vmem:[%s0 + $0x20] sm:$0xff]
    %v17 = vld [vmem:[%s0 + $0x28] sm:$0xff]
    %v18 = vld [vmem:[%s0 + $0x30] sm:$0xff]
    %v19 = vld [vmem:[%s0 + $0x38] sm:$0xff]
    %v20 = vld [vmem:[%s0 + $0x40] sm:$0xff]
    %v21 = vld [vmem:[%s0 + $0x48] sm:$0xff]
    %v22 = vld [vmem:[%s0 + $0x50] sm:$0xff]
    %v23 = vld [vmem:[%s0 + $0x58] sm:$0xff]
    %v24 = vld [vmem:[%s0 + $0x60] sm:$0xff]
    %v25 = vld [vmem:[%s0 + $0x68] sm:$0xff]
    %v26 = vld [vmem:[%s0 + $0x70] sm:$0xff]
    %v27 = vld [vmem:[%s0 + $0x78] sm:$0xff]
    %v28 = vld [vmem:[%s1] sm:$0xff]
    %v29 = vld [vmem:[%s1 + $0x8] sm:$0xff]
    %v30 = vmax.f32 %v12, %v13
    %v31 = vrot.slane %v30, 4
    %v32 = vmax.f32 %v30, %v31
    %v33 = vrot.slane %v32, 2
    %v34 = vmax.f32 %v32, %v33
    %v35 = vrot.slane %v34, 1
    %v36 = vmax.f32 %v34, %v35
    %v37 = vmax.f32 %v14, %v15
    %v38 = vrot.slane %v37, 4
    %v39 = vmax.f32 %v37, %v38
    %v40 = vrot.slane %v39, 2
    %v41 = vmax.f32 %v39, %v40
    %v42 = vrot.slane %v41, 1
    %v43 = vmax.f32 %v41, %v42
    %v44 = vmax.f32 %v16, %v17
    %v45 = vrot.slane %v44, 4
    %v46 = vmax.f32 %v44, %v45
    %v47 = vrot.slane %v46, 2
    %v48 = vmax.f32 %v46, %v47
    %v49 = vrot.slane %v48, 1
    %v50 = vmax.f32 %v48, %v49
    %v51 = vmax.f32 %v18, %v19
    %v52 = vrot.slane %v51, 4
    %v53 = vmax.f32 %v51, %v52
    %v54 = vrot.slane %v53, 2
    %v55 = vmax.f32 %v53, %v54
    %v56 = vrot.slane %v55, 1
    %v57 = vmax.f32 %v55, %v56
    %v58 = vmax.f32 %v20, %v21
    %v59 = vrot.slane %v58, 4
    %v60 = vmax.f32 %v58, %v59
    %v61 = vrot.slane %v60, 2
    %v62 = vmax.f32 %v60, %v61
    %v63 = vrot.slane %v62, 1
    %v64 = vmax.f32 %v62, %v63
    %v65 = vmax.f32 %v22, %v23
    %v66 = vrot.slane %v65, 4
    %v67 = vmax.f32 %v65, %v66
    %v68 = vrot.slane %v67, 2
    %v69 = vmax.f32 %v67, %v68
    %v70 = vrot.slane %v69, 1
    %v71 = vmax.f32 %v69, %v70
    %v72 = vmax.f32 %v24, %v25
    %v73 = vrot.slane %v72, 4
    %v74 = vmax.f32 %v72, %v73
    %v75 = vrot.slane %v74, 2
    %v76 = vmax.f32 %v74, %v75
    %v77 = vrot.slane %v76, 1
    %v78 = vmax.f32 %v76, %v77
    %v79 = vmax.f32 %v26, %v27
    %v80 = vrot.slane %v79, 4
    %v81 = vmax.f32 %v79, %v80
    %v82 = vrot.slane %v81, 2
    %v83 = vmax.f32 %v81, %v82
    %v84 = vrot.slane %v83, 1
    %v85 = vmax.f32 %v83, %v84
    %v86 = vsub.f32 %v12, %v36
    %v87 = vsub.f32 %v13, %v36
    %v88 = vsub.f32 %v14, %v43
    %v89 = vsub.f32 %v15, %v43
    %v90 = vsub.f32 %v16, %v50
    %v91 = vsub.f32 %v17, %v50
    %v92 = vsub.f32 %v18, %v57
    %v93 = vsub.f32 %v19, %v57
    %v94 = vsub.f32 %v20, %v64
    %v95 = vsub.f32 %v21, %v64
    %v96 = vsub.f32 %v22, %v71
    %v97 = vsub.f32 %v23, %v71
    %v98 = vsub.f32 %v24, %v78
    %v99 = vsub.f32 %v25, %v78
    %v100 = vsub.f32 %v26, %v85
    %v101 = vsub.f32 %v27, %v85
    %v102 = vmul.f32 %v86, 1.442695
    %v103 = vpow.pop %v102
    %v104 = vmul.f32 %v87, 1.442695
    %v105 = vpow.pop %v104
    %v106 = vmul.f32 %v88, 1.442695
    %v107 = vpow.pop %v106
    %v108 = vmul.f32 %v89, 1.442695
    %v109 = vpow.pop %v108
    %v110 = vmul.f32 %v90, 1.442695
    %v111 = vpow.pop %v110
    %v112 = vmul.f32 %v91, 1.442695
    %v113 = vpow.pop %v112
    %v114 = vmul.f32 %v92, 1.442695
    %v115 = vpow.pop %v114
    %v116 = vmul.f32 %v93, 1.442695
    %v117 = vpow.pop %v116
    %v118 = vmul.f32 %v94, 1.442695
    %v119 = vpow.pop %v118
    %v120 = vmul.f32 %v95, 1.442695
    %v121 = vpow.pop %v120
    %v122 = vmul.f32 %v96, 1.442695
    %v123 = vpow.pop %v122
    %v124 = vmul.f32 %v97, 1.442695
    %v125 = vpow.pop %v124
    %v126 = vmul.f32 %v98, 1.442695
    %v127 = vpow.pop %v126
    %v128 = vmul.f32 %v99, 1.442695
    %v129 = vpow.pop %v128
    %v130 = vmul.f32 %v100, 1.442695
    %v131 = vpow.pop %v130
    %v132 = vmul.f32 %v101, 1.442695
    %v133 = vpow.pop %v132
    %v134 = vadd.f32 %v103, %v105
    %v135 = vrot.slane %v134, 4
    %v136 = vadd.f32 %v134, %v135
    %v137 = vrot.slane %v136, 2
    %v138 = vadd.f32 %v136, %v137
    %v139 = vrot.slane %v138, 1
    %v140 = vadd.f32 %v138, %v139
    %v141 = vadd.f32 %v107, %v109
    %v142 = vrot.slane %v141, 4
    %v143 = vadd.f32 %v141, %v142
    %v144 = vrot.slane %v143, 2
    %v145 = vadd.f32 %v143, %v144
    %v146 = vrot.slane %v145, 1
    %v147 = vadd.f32 %v145, %v146
    %v148 = vadd.f32 %v111, %v113
    %v149 = vrot.slane %v148, 4
    %v150 = vadd.f32 %v148, %v149
    %v151 = vrot.slane %v150, 2
    %v152 = vadd.f32 %v150, %v151
    %v153 = vrot.slane %v152, 1
    %v154 = vadd.f32 %v152, %v153
    %v155 = vadd.f32 %v115, %v117
    %v156 = vrot.slane %v155, 4
    %v157 = vadd.f32 %v155, %v156
    %v158 = vrot.slane %v157, 2
    %v159 = vadd.f32 %v157, %v158
    %v160 = vrot.slane %v159, 1
    %v161 = vadd.f32 %v159, %v160
    %v162 = vadd.f32 %v119, %v121
    %v163 = vrot.slane %v162, 4
    %v164 = vadd.f32 %v162, %v163
    %v165 = vrot.slane %v164, 2
    %v166 = vadd.f32 %v164, %v165
    %v167 = vrot.slane %v166, 1
    %v168 = vadd.f32 %v166, %v167
    %v169 = vadd.f32 %v123, %v125
    %v170 = vrot.slane %v169, 4
    %v171 = vadd.f32 %v169, %v170
    %v172 = vrot.slane %v171, 2
    %v173 = vadd.f32 %v171, %v172
    %v174 = vrot.slane %v173, 1
    %v175 = vadd.f32 %v173, %v174
    %v176 = vadd.f32 %v127, %v129
    %v177 = vrot.slane %v176, 4
    %v178 = vadd.f32 %v176, %v177
    %v179 = vrot.slane %v178, 2
    %v180 = vadd.f32 %v178, %v179
    %v181 = vrot.slane %v180, 1
    %v182 = vadd.f32 %v180, %v181
    %v183 = vadd.f32 %v131, %v133
    %v184 = vrot.slane %v183, 4
    %v185 = vadd.f32 %v183, %v184
    %v186 = vrot.slane %v185, 2
    %v187 = vadd.f32 %v185, %v186
    %v188 = vrot.slane %v187, 1
    %v189 = vadd.f32 %v187, %v188
    %191 = vset.pattern.permute.xlu0 0
    %192 = vperm.xlu0 %191, %v28
    %v193 = vpop.permute.xlu0 %192
    %196 = vset.pattern.permute.xlu0 0
    %197 = vperm.xlu0 %196, %v29
    %v198 = vpop.permute.xlu0 %197
    %v200 = vmul.f32 %v103, %v193
    %v201 = vmul.f32 %v105, %v198
    %v202 = vmul.f32 %v107, %v193
    %v203 = vmul.f32 %v109, %v198
    %v204 = vmul.f32 %v111, %v193
    %v205 = vmul.f32 %v113, %v198
    %v206 = vmul.f32 %v115, %v193
    %v207 = vmul.f32 %v117, %v198
    %v208 = vmul.f32 %v119, %v193
    %v209 = vmul.f32 %v121, %v198
    %v210 = vmul.f32 %v123, %v193
    %v211 = vmul.f32 %v125, %v198
    %v212 = vmul.f32 %v127, %v193
    %v213 = vmul.f32 %v129, %v198
    %v214 = vmul.f32 %v131, %v193
    %v215 = vmul.f32 %v133, %v198
    %v216 = vadd.f32 %v200, %v201
    %v217 = vrot.slane %v216, 4
    %v218 = vadd.f32 %v216, %v217
    %v219 = vrot.slane %v218, 2
    %v220 = vadd.f32 %v218, %v219
    %v221 = vrot.slane %v220, 1
    %v222 = vadd.f32 %v220, %v221
    %v223 = vadd.f32 %v202, %v203
    %v224 = vrot.slane %v223, 4
    %v225 = vadd.f32 %v223, %v224
    %v226 = vrot.slane %v225, 2
    %v227 = vadd.f32 %v225, %v226
    %v228 = vrot.slane %v227, 1
    %v229 = vadd.f32 %v227, %v228
    %v230 = vadd.f32 %v204, %v205
    %v231 = vrot.slane %v230, 4
    %v232 = vadd.f32 %v230, %v231
    %v233 = vrot.slane %v232, 2
    %v234 = vadd.f32 %v232, %v233
    %v235 = vrot.slane %v234, 1
    %v236 = vadd.f32 %v234, %v235
    %v237 = vadd.f32 %v206, %v207
    %v238 = vrot.slane %v237, 4
    %v239 = vadd.f32 %v237, %v238
    %v240 = vrot.slane %v239, 2
    %v241 = vadd.f32 %v239, %v240
    %v242 = vrot.slane %v241, 1
    %v243 = vadd.f32 %v241, %v242
    %v244 = vadd.f32 %v208, %v209
    %v245 = vrot.slane %v244, 4
    %v246 = vadd.f32 %v244, %v245
    %v247 = vrot.slane %v246, 2
    %v248 = vadd.f32 %v246, %v247
    %v249 = vrot.slane %v248, 1
    %v250 = vadd.f32 %v248, %v249
    %v251 = vadd.f32 %v210, %v211
    %v252 = vrot.slane %v251, 4
    %v253 = vadd.f32 %v251, %v252
    %v254 = vrot.slane %v253, 2
    %v255 = vadd.f32 %v253, %v254
    %v256 = vrot.slane %v255, 1
    %v257 = vadd.f32 %v255, %v256
    %v258 = vadd.f32 %v212, %v213
    %v259 = vrot.slane %v258, 4
    %v260 = vadd.f32 %v258, %v259
    %v261 = vrot.slane %v260, 2
    %v262 = vadd.f32 %v260, %v261
    %v263 = vrot.slane %v262, 1
    %v264 = vadd.f32 %v262, %v263
    %v265 = vadd.f32 %v214, %v215
    %v266 = vrot.slane %v265, 4
    %v267 = vadd.f32 %v265, %v266
    %v268 = vrot.slane %v267, 2
    %v269 = vadd.f32 %v267, %v268
    %v270 = vrot.slane %v269, 1
    %v271 = vadd.f32 %v269, %v270
    %v272 = vrcp.pop %v140
    %v273 = vrcp.pop %v147
    %v274 = vrcp.pop %v154
    %v275 = vrcp.pop %v161
    %v276 = vrcp.pop %v168
    %v277 = vrcp.pop %v175
    %v278 = vrcp.pop %v182
    %v279 = vrcp.pop %v189
    %v280 = vmul.f32 %v222, %v272
    %v281 = vmul.f32 %v229, %v273
    %v282 = vmul.f32 %v236, %v274
    %v283 = vmul.f32 %v243, %v275
    %v284 = vmul.f32 %v250, %v276
    %v285 = vmul.f32 %v257, %v277
    %v286 = vmul.f32 %v264, %v278
    %v287 = vmul.f32 %v271, %v279
    %288 = vst [vmem:[#allocation2] sm:$0x1] %v280
    %289 = vst [vmem:[#allocation2 + $0x1] sm:$0x1] %v281
    %290 = vst [vmem:[#allocation2 + $0x2] sm:$0x1] %v282
    %291 = vst [vmem:[#allocation2 + $0x3] sm:$0x1] %v283
    %292 = vst [vmem:[#allocation2 + $0x4] sm:$0x1] %v284
    %293 = vst [vmem:[#allocation2 + $0x5] sm:$0x1] %v285
    %294 = vst [vmem:[#allocation2 + $0x6] sm:$0x1] %v286
    %295 = vst [vmem:[#allocation2 + $0x7] sm:$0x1] %v287
    // Predicated region
    $region10: #{dfl_forward.1} parent=1 // pred_check
      _
    $region11: #{dfl_forward.1} parent=1 // pred_check_branch
      %297 = sbr.rel (0) target = $region13
    $region12: #{dfl_forward.1} parent=1 // pred_region
      %s299 = ssub.s32 128, 128
      %300 = vsyncadd [#allocation3], %s299
      %s301 = sshll.u32 [#allocation2], 4
      %s302 = int_to_ptr.vmem [resolvable:$true] %s301
      %307 = dma.vmem_to_hbm [thread:$0]  %s302, 128, %s2, [#allocation3], 16, 16, 1
    $region13: #{dfl_forward.1} parent=1 // pred_fallthru
      _
    // Predicated region
    $region14: #{dfl_forward.1} parent=1 // pred_check
      _
    $region15: #{dfl_forward.1} parent=1 // pred_check_branch
      %309 = sbr.rel (0) target = $region17
    $region16: #{dfl_forward.1} parent=1 // pred_region
      %310 = dma.done [#allocation3], 128
    $region17: #{dfl_forward.1} parent=1 // pred_fallthru
      _
    %311 = vsyncpa [#allocation3], 1

</llo_original>
